<compile_context>
chip_gen: v7x
topology: tpu7x:2x2x1
jax: 0.10.0
libtpu: 0.0.40
codegen_flags: <defaults>
</compile_context>

<pallas_src>
import functools

import jax
import jax.numpy as jnp
from jax.experimental import pallas as pl
from jax.experimental.pallas import tpu as pltpu

LEAKY_SLOPE = 0.01  # F.leaky_relu default negative_slope


def _leaky_relu(z):
    # mul + max: 2 VALU ops, no predicate vreg; exact for slope in (0, 1).
    return jnp.maximum(z, LEAKY_SLOPE * z)


def _round_up(n, m):
    return ((n + m - 1) // m) * m


def critic_kernel(x_ref, u_ref, w1_ref, b1_ref, w2_ref, b2_ref, w3_ref, b3_ref,
                  out_ref):
    """One batch tile of the Critic, fully resident in VMEM.

    x  : [Bt, S]   u : [Bt, A]      streamed per tile (native HBM dtype)
    w1 : [S+A, H]                   VMEM-resident (compute dtype)
    b1 : [1, H]  f32
    w2 : [H, H]                     VMEM-resident (compute dtype)
    b2 : [1, H]  f32
    w3 : [8, H]  f32                fc3 weight in row 0, rows 1..7 zero
    b3 : [1, 1]  f32                SMEM scalar
    out: [1, Bt] f32                lane-dense: batch mapped to lanes
    """
    s = x_ref.shape[1]
    wdt = w1_ref.dtype

    x = x_ref[...].astype(wdt)
    u = u_ref[...].astype(wdt)

    # fc1: cat([x, u], 1) @ W1  ==  x @ W1[:S] + u @ W1[S:]   (no concat needed)
    h1 = jnp.dot(x, w1_ref[:s, :], preferred_element_type=jnp.float32)
    h1 = h1 + jnp.dot(u, w1_ref[s:, :], preferred_element_type=jnp.float32)
    h1 = _leaky_relu(h1 + b1_ref[...])

    # fc2 (cast back to the streaming dtype so the bf16 MXU path is used).
    h2 = jnp.dot(h1.astype(wdt), w2_ref[...], preferred_element_type=jnp.float32)
    h2 = _leaky_relu(h2 + b2_ref[...])

    # fc3: contract over H with the batch landing on lanes -> [8, Bt]; row 0
    # holds the real output (rows 1..7 of w3 are zero).  This keeps the store
    # lane-dense (one unmasked row) instead of a [Bt, 1] masked-store column.
    q = jax.lax.dot_general(w3_ref[...], h2, (((1,), (1,)), ((), ())),
                            preferred_element_type=jnp.float32)
    out_ref[...] = q[0:1, :] + b3_ref[0, 0]


def critic_reference(x, u, params):
    """Pure-JAX reference; also used as the small-batch fast path."""
    w1, b1, w2, b2, w3, b3 = params
    h = jnp.concatenate([x, u], axis=1).astype(jnp.float32)
    h = _leaky_relu(h @ w1 + b1.reshape(1, -1))
    h = _leaky_relu(h @ w2 + b2.reshape(1, -1))
    return h @ w3.reshape(-1, 1) + b3.reshape(1, 1)


@functools.partial(
    jax.jit,
    static_argnames=("compute_dtype", "max_batch_tile", "small_batch_threshold"))
def critic_forward(x, u, params, compute_dtype=jnp.float32,
                   max_batch_tile=4096, small_batch_threshold=128):
    """x: [B, state_dim], u: [B, action_dim] -> [B, 1] (f32).

    Use compute_dtype=jnp.bfloat16 on v6e/v7x (bf16 VPU + MXU) to halve the
    weight / input MXU stream; keep f32 (default) on v5e.
    """
    w1, b1, w2, b2, w3, b3 = params
    B, S = x.shape
    A = u.shape[1]
    K, H = w1.shape
    assert K == S + A

    # Tiny batches: pallas_call launch + pipeline prologue dominate; XLA wins.
    if B < small_batch_threshold:
        return critic_reference(x, u, params)

    cdt = jnp.dtype(compute_dtype)

    # --- weight / bias preparation (tiny, done once per call in XLA) ---------
    # Ragged hidden dims > 128 are padded to a lane multiple; exact because the
    # padded columns stay zero through bias + leaky_relu and contribute nothing.
    Hp = H if (H <= 128 or H % 128 == 0) else _round_up(H, 128)
    w1c = w1.astype(cdt)
    w2c = w2.astype(cdt)
    b1c = b1.reshape(1, H).astype(jnp.float32)
    b2c = b2.reshape(1, H).astype(jnp.float32)
    if Hp != H:
        w1c = jnp.pad(w1c, ((0, 0), (0, Hp - H)))
        w2c = jnp.pad(w2c, ((0, Hp - H), (0, Hp - H)))
        b1c = jnp.pad(b1c, ((0, 0), (0, Hp - H)))
        b2c = jnp.pad(b2c, ((0, 0), (0, Hp - H)))
    # fc3 weight in row 0 of an 8-sublane slab (keeps the MXU lhs aligned).
    w3r = jnp.zeros((8, Hp), jnp.float32).at[0, :H].set(
        w3.reshape(H).astype(jnp.float32))
    b3c = b3.reshape(1, 1).astype(jnp.float32)

    # --- batch tiling: balanced tiles under a generation-aware VMEM budget ---
    try:
        vmem_cap = int(pltpu.get_tpu_info().vmem_capacity_bytes)
    except Exception:
        vmem_cap = 64 << 20            # v7x per-core VMEM; safe on every gen
    vmem_budget = min(vmem_cap, 128 << 20) // 3   # headroom for compiler temps

    in_row_bytes = S * x.dtype.itemsize + A * u.dtype.itemsize
    per_row = (2 * in_row_bytes            # x, u tiles, double-buffered
               + 2 * 4                     # lane-dense out row, double-buffered
               + 4 * Hp * 4                # h1/h2 + MXU result copies (f32)
               + 2 * Hp * cdt.itemsize)    # compute-dtype cast of h1
    w_bytes = 2 * (K * Hp + Hp * Hp) * cdt.itemsize + (11 * Hp + 1) * 4
    fit_rows = max(128, (vmem_budget - w_bytes) // max(per_row, 1))
    max_tile = max(128, (min(max_batch_tile, int(fit_rows)) // 128) * 128)

    num_tiles = pl.cdiv(B, max_tile)
    if B >= 256:
        num_tiles = max(num_tiles, 2)      # >=2 parallel tiles -> both v7x TCs
    b_tile = _round_up(pl.cdiv(B, num_tiles), 128)
    num_tiles = pl.cdiv(B, b_tile)
    B_ceil = num_tiles * b_tile

    need = per_row * b_tile + w_bytes
    vmem_limit = int(min(vmem_cap, max(16 << 20, 3 * need)))

    out_row = pl.pallas_call(
        critic_kernel,
        out_shape=jax.ShapeDtypeStruct((1, B_ceil), jnp.float32),
        grid=(num_tiles,),
        in_specs=[
            pl.BlockSpec((b_tile, S), lambda i: (i, 0)),        # x: streamed
            pl.BlockSpec((b_tile, A), lambda i: (i, 0)),        # u: streamed
            pl.BlockSpec((K, Hp), lambda i: (0, 0)),            # w1: resident
            pl.BlockSpec((1, Hp), lambda i: (0, 0)),            # b1
            pl.BlockSpec((Hp, Hp), lambda i: (0, 0)),           # w2: resident
            pl.BlockSpec((1, Hp), lambda i: (0, 0)),            # b2
            pl.BlockSpec((8, Hp), lambda i: (0, 0)),            # w3 (row 0)
            pl.BlockSpec(memory_space=pltpu.MemorySpace.SMEM),  # b3 scalar
        ],
        out_specs=pl.BlockSpec((1, b_tile), lambda i: (0, i)),
        compiler_params=pltpu.CompilerParams(
            dimension_semantics=("parallel",),
            vmem_limit_bytes=vmem_limit,
        ),
    )(x, u, w1c, b1c, w2c, b2c, w3r, b3c)

    # Lane-dense (1, B_ceil) row -> (B, 1) column; padded tail rows discarded.
    return out_row[0, :B].reshape(B, 1)


def xavier_uniform(key, fan_in, fan_out, shape):
    limit = (6.0 / (fan_in + fan_out)) ** 0.5
    return jax.random.uniform(key, shape, jnp.float32, -limit, limit)


def init_critic_params(key, state_dim, hidden_dim, action_dim):
    """Matches Critic.initialize_weights(): xavier_uniform weights, zero bias.

    Weights are stored [in, out] (transpose of torch's [out, in]); xavier
    fan_in/fan_out are symmetric so the init distribution is identical.
    """
    k1, k2, k3 = jax.random.split(key, 3)
    in1 = state_dim + action_dim
    w1 = xavier_uniform(k1, in1, hidden_dim, (in1, hidden_dim))
    b1 = jnp.zeros((1, hidden_dim), jnp.float32)
    w2 = xavier_uniform(k2, hidden_dim, hidden_dim, (hidden_dim, hidden_dim))
    b2 = jnp.zeros((1, hidden_dim), jnp.float32)
    w3 = xavier_uniform(k3, hidden_dim, 1, (hidden_dim, 1))
    b3 = jnp.zeros((1, 1), jnp.float32)
    return (w1, b1, w2, b2, w3, b3)


if __name__ == "__main__":
    state_dim, action_dim, hidden_dim = 16, 8, 32
    key = jax.random.PRNGKey(0)
    kx, ku, kp = jax.random.split(key, 3)
    params = init_critic_params(kp, state_dim, hidden_dim, action_dim)

    # --- kernel path, divisible grid (2 tiles of 128), f32 ---
    batch = 256
    x = jax.random.normal(kx, (batch, state_dim), jnp.float32)
    u = jax.random.normal(ku, (batch, action_dim), jnp.float32)
    out = critic_forward(x, u, params)
    jax.block_until_ready(out)
    ref = critic_reference(x, u, params)
    assert out.shape == (batch, 1)
    assert jnp.allclose(out, ref, atol=1e-4, rtol=1e-4)

    # --- kernel path, balanced tiles with a ragged last tile (2 x 640), f32 ---
    batch2 = 1030
    kx2, ku2 = jax.random.split(jax.random.PRNGKey(1))
    x2 = jax.random.normal(kx2, (batch2, state_dim), jnp.float32)
    u2 = jax.random.normal(ku2, (batch2, action_dim), jnp.float32)
    out2 = critic_forward(x2, u2, params)
    jax.block_until_ready(out2)
    ref2 = critic_reference(x2, u2, params)
    assert out2.shape == (batch2, 1)
    assert jnp.allclose(out2, ref2, atol=1e-4, rtol=1e-4)

    # --- bf16 streaming path (recommended default on v6e/v7x) ---
    xb = x.astype(jnp.bfloat16)
    ub = u.astype(jnp.bfloat16)
    out_bf = critic_forward(xb, ub, params, compute_dtype=jnp.bfloat16)
    jax.block_until_ready(out_bf)
    assert out_bf.shape == (batch, 1)
    assert jnp.allclose(out_bf, ref, atol=2e-1, rtol=1e-1)

    # --- small-batch fast path (pure XLA, no pallas_call) ---
    out_s = critic_forward(x[:8], u[:8], params)
    jax.block_until_ready(out_s)
    assert out_s.shape == (8, 1)
    assert jnp.allclose(out_s, ref[:8], atol=1e-5, rtol=1e-5)

    print("KERNEL_OK")
</pallas_src>

<mosaic_0001>
module attributes {stable_mosaic.version = 11 : i64} {
  func.func @critic_kernel(%arg0: i32, %arg1: memref<128x16xf32, #tpu.memory_space<vmem>>, %arg2: memref<128x8xf32, #tpu.memory_space<vmem>>, %arg3: memref<24x32xf32, #tpu.memory_space<vmem>>, %arg4: memref<1x32xf32, #tpu.memory_space<vmem>>, %arg5: memref<32x32xf32, #tpu.memory_space<vmem>>, %arg6: memref<1x32xf32, #tpu.memory_space<vmem>>, %arg7: memref<8x32xf32, #tpu.memory_space<vmem>>, %arg8: memref<1x1xf32, #tpu.memory_space<smem>>, %arg9: memref<1x128xf32, #tpu.memory_space<vmem>>) attributes {dimension_semantics = [#tpu.dimension_semantics<parallel>], iteration_bounds = array<i64: 2>, scalar_prefetch = 0 : i64, scratch_operands = 0 : i64, tpu.core_type = #tpu.core_type<tc>, window_params = [{transform_indices = @transform_0, window_bounds = array<i64: 128, 16>}, {transform_indices = @transform_1, window_bounds = array<i64: 128, 8>}, {pipeline_mode = #tpu.pipeline_mode<synchronous>, transform_indices = @transform_2, window_bounds = array<i64: 24, 32>}, {pipeline_mode = #tpu.pipeline_mode<synchronous>, transform_indices = @transform_3, window_bounds = array<i64: 1, 32>}, {pipeline_mode = #tpu.pipeline_mode<synchronous>, transform_indices = @transform_4, window_bounds = array<i64: 32, 32>}, {pipeline_mode = #tpu.pipeline_mode<synchronous>, transform_indices = @transform_5, window_bounds = array<i64: 1, 32>}, {pipeline_mode = #tpu.pipeline_mode<synchronous>, transform_indices = @transform_6, window_bounds = array<i64: 8, 32>}, {transform_indices = @transform_7, window_bounds = array<i64: 1, 1>}, {transform_indices = @transform_8, window_bounds = array<i64: 1, 128>}]} {
    %c0 = arith.constant 0 : index
    %c0_0 = arith.constant 0 : index
    %0 = vector.load %arg1[%c0, %c0_0] : memref<128x16xf32, #tpu.memory_space<vmem>>, vector<128x16xf32>
    %c0_1 = arith.constant 0 : index
    %c0_2 = arith.constant 0 : index
    %1 = vector.load %arg2[%c0_1, %c0_2] : memref<128x8xf32, #tpu.memory_space<vmem>>, vector<128x8xf32>
    %c0_3 = arith.constant 0 : index
    %c0_4 = arith.constant 0 : index
    %2 = vector.load %arg3[%c0_3, %c0_4] : memref<24x32xf32, #tpu.memory_space<vmem>>, vector<16x32xf32>
    %cst = arith.constant dense<0.000000e+00> : vector<128x32xf32>
    %3 = tpu.matmul %0, %2, %cst {dimension_numbers = #tpu.dot_dimension_numbers<[1], [0], [0], [1], [0, 0, 1, 1], [], []>} : vector<128x16xf32>, vector<16x32xf32>, vector<128x32xf32> -> vector<128x32xf32>
    %c16 = arith.constant 16 : index
    %c0_5 = arith.constant 0 : index
    %4 = vector.load %arg3[%c16, %c0_5] : memref<24x32xf32, #tpu.memory_space<vmem>>, vector<8x32xf32>
    %cst_6 = arith.constant dense<0.000000e+00> : vector<128x32xf32>
    %5 = tpu.matmul %1, %4, %cst_6 {dimension_numbers = #tpu.dot_dimension_numbers<[1], [0], [0], [1], [0, 0, 1, 1], [], []>} : vector<128x8xf32>, vector<8x32xf32>, vector<128x32xf32> -> vector<128x32xf32>
    %6 = arith.addf %3, %5 : vector<128x32xf32>
    %c0_7 = arith.constant 0 : index
    %c0_8 = arith.constant 0 : index
    %7 = vector.load %arg4[%c0_7, %c0_8] : memref<1x32xf32, #tpu.memory_space<vmem>>, vector<1x32xf32>
    %8 = vector.broadcast %7 : vector<1x32xf32> to vector<128x32xf32>
    %9 = arith.addf %6, %8 : vector<128x32xf32>
    %cst_9 = arith.constant 0.00999999977 : f32
    %10 = vector.broadcast %cst_9 : f32 to vector<128x32xf32>
    %11 = arith.mulf %10, %9 : vector<128x32xf32>
    %12 = arith.maximumf %9, %11 : vector<128x32xf32>
    %c0_10 = arith.constant 0 : index
    %c0_11 = arith.constant 0 : index
    %13 = vector.load %arg5[%c0_10, %c0_11] : memref<32x32xf32, #tpu.memory_space<vmem>>, vector<32x32xf32>
    %cst_12 = arith.constant dense<0.000000e+00> : vector<128x32xf32>
    %14 = tpu.matmul %12, %13, %cst_12 {dimension_numbers = #tpu.dot_dimension_numbers<[1], [0], [0], [1], [0, 0, 1, 1], [], []>} : vector<128x32xf32>, vector<32x32xf32>, vector<128x32xf32> -> vector<128x32xf32>
    %c0_13 = arith.constant 0 : index
    %c0_14 = arith.constant 0 : index
    %15 = vector.load %arg6[%c0_13, %c0_14] : memref<1x32xf32, #tpu.memory_space<vmem>>, vector<1x32xf32>
    %16 = vector.broadcast %15 : vector<1x32xf32> to vector<128x32xf32>
    %17 = arith.addf %14, %16 : vector<128x32xf32>
    %cst_15 = arith.constant 0.00999999977 : f32
    %18 = vector.broadcast %cst_15 : f32 to vector<128x32xf32>
    %19 = arith.mulf %18, %17 : vector<128x32xf32>
    %20 = arith.maximumf %17, %19 : vector<128x32xf32>
    %c0_16 = arith.constant 0 : index
    %c0_17 = arith.constant 0 : index
    %21 = vector.load %arg7[%c0_16, %c0_17] : memref<8x32xf32, #tpu.memory_space<vmem>>, vector<8x32xf32>
    %cst_18 = arith.constant dense<0.000000e+00> : vector<8x128xf32>
    %22 = tpu.matmul %21, %20, %cst_18 {dimension_numbers = #tpu.dot_dimension_numbers<[1], [1], [0], [0], [0, 0, 1, 0], [], []>} : vector<8x32xf32>, vector<128x32xf32>, vector<8x128xf32> -> vector<8x128xf32>
    %23 = vector.extract_strided_slice %22 {offsets = [0, 0], sizes = [1, 128], strides = [1, 1]} : vector<8x128xf32> to vector<1x128xf32>
    %c0_19 = arith.constant 0 : index
    %c0_20 = arith.constant 0 : index
    %24 = memref.load %arg8[%c0_19, %c0_20] : memref<1x1xf32, #tpu.memory_space<smem>>
    %25 = vector.broadcast %24 : f32 to vector<1x128xf32>
    %26 = arith.addf %23, %25 : vector<1x128xf32>
    %c0_21 = arith.constant 0 : index
    %c0_22 = arith.constant 0 : index
    %27 = vector.load %arg9[%c0_21, %c0_22] : memref<1x128xf32, #tpu.memory_space<vmem>>, vector<1x128xf32>
    tpu.vector_store %arg9[%c0_21, %c0_22], %26 {strides = array<i32>} : memref<1x128xf32, #tpu.memory_space<vmem>>, vector<1x128xf32>,
    return
  }
  func.func @transform_0(%arg0: i32) -> (i32, i32) {
    %c0_i32 = arith.constant 0 : i32
    %c0_i32_0 = arith.constant 0 : i32
    return %arg0, %c0_i32 : i32, i32
  }
  func.func @transform_1(%arg0: i32) -> (i32, i32) {
    %c0_i32 = arith.constant 0 : i32
    %c0_i32_0 = arith.constant 0 : i32
    return %arg0, %c0_i32 : i32, i32
  }
  func.func @transform_2(%arg0: i32) -> (i32, i32) {
    %c0_i32 = arith.constant 0 : i32
    %c0_i32_0 = arith.constant 0 : i32
    %c0_i32_1 = arith.constant 0 : i32
    return %c0_i32, %c0_i32_0 : i32, i32
  }
  func.func @transform_3(%arg0: i32) -> (i32, i32) {
    %c0_i32 = arith.constant 0 : i32
    %c0_i32_0 = arith.constant 0 : i32
    %c0_i32_1 = arith.constant 0 : i32
    return %c0_i32, %c0_i32_0 : i32, i32
  }
  func.func @transform_4(%arg0: i32) -> (i32, i32) {
    %c0_i32 = arith.constant 0 : i32
    %c0_i32_0 = arith.constant 0 : i32
    %c0_i32_1 = arith.constant 0 : i32
    return %c0_i32, %c0_i32_0 : i32, i32
  }
  func.func @transform_5(%arg0: i32) -> (i32, i32) {
    %c0_i32 = arith.constant 0 : i32
    %c0_i32_0 = arith.constant 0 : i32
    %c0_i32_1 = arith.constant 0 : i32
    return %c0_i32, %c0_i32_0 : i32, i32
  }
  func.func @transform_6(%arg0: i32) -> (i32, i32) {
    %c0_i32 = arith.constant 0 : i32
    %c0_i32_0 = arith.constant 0 : i32
    %c0_i32_1 = arith.constant 0 : i32
    return %c0_i32, %c0_i32_0 : i32, i32
  }
  func.func @transform_7(%arg0: i32) -> (i32, i32) {
    %c0_i32 = arith.constant 0 : i32
    %c0_i32_0 = arith.constant 0 : i32
    %c0_i32_1 = arith.constant 0 : i32
    return %c0_i32, %c0_i32_0 : i32, i32
  }
  func.func @transform_8(%arg0: i32) -> (i32, i32) {
    %c0_i32 = arith.constant 0 : i32
    %c0_i32_0 = arith.constant 0 : i32
    return %c0_i32, %arg0 : i32, i32
  }
}

</mosaic_0001>

<llo_original>
// kernel: critic_forward.1
$region0: #{critic_forward.1}
  #allocation0 [shape = 'u32[]', space=smem, size = 0x4, offset = 0x4, fixed_abs, tag = 'smem constant byte address 0x4 - core index']
  #allocation1 [shape = 'u32[144,128]{1,0:T(1,128)}', space=vmem, size = 0x12000, scoped, tag = 'internal scratch']
  #allocation2 [shape = 'f32[1,1]{1,0:T(1,128)S(6)}', space=smem, size = 0x200, scoped, tag = 'scoped memory for critic_forward.1']
  %s0 = inlined_call_operand.vmem [shape: f32[256,16], index: 0, kind: input, shape index: {}]
  %s1 = inlined_call_operand.vmem [shape: f32[256,8], index: 1, kind: input, shape index: {}]
  %s2 = inlined_call_operand.vmem [shape: f32[24,32], index: 2, kind: input, shape index: {}]
  %s3 = inlined_call_operand.vmem [shape: f32[1,32], index: 3, kind: input, shape index: {}]
  %s4 = inlined_call_operand.vmem [shape: f32[32,32], index: 4, kind: input, shape index: {}]
  %s5 = inlined_call_operand.vmem [shape: f32[1,32], index: 5, kind: input, shape index: {}]
  %s6 = inlined_call_operand.vmem [shape: f32[8,32], index: 6, kind: input, shape index: {}]
  %s7 = inlined_call_operand.<no memory space> [shape: f32[1,1], index: 7, kind: input, shape index: {}]
  %s8 = inlined_call_operand.hbm [shape: f32[1,256], index: 8, kind: output, shape index: {}]
  %s9 = sld [smem:[#allocation0]]
  $region65: #{critic_forward.1} parent=0
    _
  %s11 = ssub.s32 1, %s9
  %s12 = scalar_select 0, %s11, %s9
  %13 = sst [smem:[#allocation2]] %s7
  $region1: #{critic_forward.1} parent=0
    #allocation3 [shape = 'u8[1024]{0}', space=vmem, size = 0x400, scoped, tag = 'output window, operand 0']
    #allocation4 [shape = 's32[2]{0}', space=sflag, size = 0x8, scoped, tag = 'scoped memory for critic_forward.1']
    %14 = vsyncpa [#allocation4], 0
    %s15 = scalar_lea.sflag [#allocation4], 1
    %16 = vsyncpa %s15, 0
    loop: start=0, step=1, limit=4
    $region2: #{critic_forward.1} parent=1 // loop_pre_header
      _
    $region3: #{critic_forward.1} parent=1 // loop_header
      %s18 = sphi 0, %s22
      %p19 = scmp.ge.s32.totalorder %s18, 4
      %s28 = sphi 0, %s30
      %s31 = sphi 0, %s28
      %s32 = sphi 0, %s31
      %s48 = sphi 0, %s32
      %s54 = sphi 0, %s56
      %s57 = sphi 0, %s54
      %s58 = sphi 0, %s57
      %s74 = sphi 0, %s58
      %s78 = sphi 0, %s78
      %s80 = sphi 0, %s78
      %s81 = sphi 0, %s80
      %s95 = sphi 0, %s81
      %s99 = sphi 0, %s99
      %s101 = sphi 0, %s99
      %s102 = sphi 0, %s101
      %s116 = sphi 0, %s102
      %s120 = sphi 0, %s120
      %s122 = sphi 0, %s120
      %s123 = sphi 0, %s122
      %s137 = sphi 0, %s123
      %s141 = sphi 0, %s141
      %s143 = sphi 0, %s141
      %s144 = sphi 0, %s143
      %s158 = sphi 0, %s144
      %s162 = sphi 0, %s162
      %s164 = sphi 0, %s162
      %s165 = sphi 0, %s164
      %s179 = sphi 0, %s165
      %s183 = sphi 0, %s183
      %s185 = sphi 0, %s183
      %s186 = sphi 0, %s185
      %s200 = sphi 0, %s186
      %s206 = sphi 0, %s208
      %s209 = sphi 0, %s206
      %s210 = sphi 0, %s209
      %s226 = sphi 0, %s210
    $region4: #{critic_forward.1} parent=1 // loop_header_branch
      %21 = sbr.rel (%p19) target = $region8
    $region5: #{critic_forward.1} parent=1 // loop_body
      %s23 = ssub.s32 %s18, 1
      %s24 = ssub.s32 %s18, 2
      %s25 = sadd.s32 %s18, 1
      %s26 = ssub.s32 %s18, %s25
      %p27 = scmp.eq.s32.totalorder %s26, 0
      %s29 = sadd.s32 %s28, 1
      %s30 = scalar_select %p27, %s28, %s29
      %p33 = pneg %p27
      %p34 = scmp.eq.s32.totalorder %s18, 1
      %p35 = por %p33, %p34
      %p36 = scmp.ne.s32.totalorder %s28, %s31
      %p37 = scmp.eq.s32.totalorder %s18, 0
      %p38 = por %p36, %p37
      %p39 = scmp.ne.s32.totalorder %s28, %s31
      %p40 = scmp.eq.s32.totalorder %s23, 1
      %p41 = por %p39, %p40
      %p42 = scmp.ne.s32.totalorder %s31, %s32
      %p43 = scmp.eq.s32.totalorder %s23, 0
      %p44 = por %p42, %p43
      %p45 = scmp.ne.s32.totalorder %s31, %s32
      %p46 = scmp.eq.s32.totalorder %s24, 1
      %p47 = por %p45, %p46
      %p49 = scmp.ne.s32.totalorder %s32, %s48
      %p50 = scmp.eq.s32.totalorder %s24, 0
      %p51 = por %p49, %p50
      %s52 = ssub.s32 %s18, %s25
      %p53 = scmp.eq.s32.totalorder %s52, 0
      %s55 = sadd.s32 %s54, 1
      %s56 = scalar_select %p53, %s54, %s55
      %p59 = pneg %p53
      %p60 = scmp.eq.s32.totalorder %s18, 1
      %p61 = por %p59, %p60
      %p62 = scmp.ne.s32.totalorder %s54, %s57
      %p63 = scmp.eq.s32.totalorder %s18, 0
      %p64 = por %p62, %p63
      %p65 = scmp.ne.s32.totalorder %s54, %s57
      %p66 = scmp.eq.s32.totalorder %s23, 1
      %p67 = por %p65, %p66
      %p68 = scmp.ne.s32.totalorder %s57, %s58
      %p69 = scmp.eq.s32.totalorder %s23, 0
      %p70 = por %p68, %p69
      %p71 = scmp.ne.s32.totalorder %s57, %s58
      %p72 = scmp.eq.s32.totalorder %s24, 1
      %p73 = por %p71, %p72
      %p75 = scmp.ne.s32.totalorder %s58, %s74
      %p76 = scmp.eq.s32.totalorder %s24, 0
      %p77 = por %p75, %p76
      %s79 = sadd.s32 %s78, 1
      %p82 = scmp.eq.s32.totalorder %s18, 1
      %p83 = scmp.ne.s32.totalorder %s78, %s80
      %p84 = scmp.eq.s32.totalorder %s18, 0
      %p85 = por %p83, %p84
      %p86 = scmp.ne.s32.totalorder %s78, %s80
      %p87 = scmp.eq.s32.totalorder %s23, 1
      %p88 = por %p86, %p87
      %p89 = scmp.ne.s32.totalorder %s80, %s81
      %p90 = scmp.eq.s32.totalorder %s23, 0
      %p91 = por %p89, %p90
      %p92 = scmp.ne.s32.totalorder %s80, %s81
      %p93 = scmp.eq.s32.totalorder %s24, 1
      %p94 = por %p92, %p93
      %p96 = scmp.ne.s32.totalorder %s81, %s95
      %p97 = scmp.eq.s32.totalorder %s24, 0
      %p98 = por %p96, %p97
      %s100 = sadd.s32 %s99, 1
      %p103 = scmp.eq.s32.totalorder %s18, 1
      %p104 = scmp.ne.s32.totalorder %s99, %s101
      %p105 = scmp.eq.s32.totalorder %s18, 0
      %p106 = por %p104, %p105
      %p107 = scmp.ne.s32.totalorder %s99, %s101
      %p108 = scmp.eq.s32.totalorder %s23, 1
      %p109 = por %p107, %p108
      %p110 = scmp.ne.s32.totalorder %s101, %s102
      %p111 = scmp.eq.s32.totalorder %s23, 0
      %p112 = por %p110, %p111
      %p113 = scmp.ne.s32.totalorder %s101, %s102
      %p114 = scmp.eq.s32.totalorder %s24, 1
      %p115 = por %p113, %p114
      %p117 = scmp.ne.s32.totalorder %s102, %s116
      %p118 = scmp.eq.s32.totalorder %s24, 0
      %p119 = por %p117, %p118
      %s121 = sadd.s32 %s120, 1
      %p124 = scmp.eq.s32.totalorder %s18, 1
      %p125 = scmp.ne.s32.totalorder %s120, %s122
      %p126 = scmp.eq.s32.totalorder %s18, 0
      %p127 = por %p125, %p126
      %p128 = scmp.ne.s32.totalorder %s120, %s122
      %p129 = scmp.eq.s32.totalorder %s23, 1
      %p130 = por %p128, %p129
      %p131 = scmp.ne.s32.totalorder %s122, %s123
      %p132 = scmp.eq.s32.totalorder %s23, 0
      %p133 = por %p131, %p132
      %p134 = scmp.ne.s32.totalorder %s122, %s123
      %p135 = scmp.eq.s32.totalorder %s24, 1
      %p136 = por %p134, %p135
      %p138 = scmp.ne.s32.totalorder %s123, %s137
      %p139 = scmp.eq.s32.totalorder %s24, 0
      %p140 = por %p138, %p139
      %s142 = sadd.s32 %s141, 1
      %p145 = scmp.eq.s32.totalorder %s18, 1
      %p146 = scmp.ne.s32.totalorder %s141, %s143
      %p147 = scmp.eq.s32.totalorder %s18, 0
      %p148 = por %p146, %p147
      %p149 = scmp.ne.s32.totalorder %s141, %s143
      %p150 = scmp.eq.s32.totalorder %s23, 1
      %p151 = por %p149, %p150
      %p152 = scmp.ne.s32.totalorder %s143, %s144
      %p153 = scmp.eq.s32.totalorder %s23, 0
      %p154 = por %p152, %p153
      %p155 = scmp.ne.s32.totalorder %s143, %s144
      %p156 = scmp.eq.s32.totalorder %s24, 1
      %p157 = por %p155, %p156
      %p159 = scmp.ne.s32.totalorder %s144, %s158
      %p160 = scmp.eq.s32.totalorder %s24, 0
      %p161 = por %p159, %p160
      %s163 = sadd.s32 %s162, 1
      %p166 = scmp.eq.s32.totalorder %s18, 1
      %p167 = scmp.ne.s32.totalorder %s162, %s164
      %p168 = scmp.eq.s32.totalorder %s18, 0
      %p169 = por %p167, %p168
      %p170 = scmp.ne.s32.totalorder %s162, %s164
      %p171 = scmp.eq.s32.totalorder %s23, 1
      %p172 = por %p170, %p171
      %p173 = scmp.ne.s32.totalorder %s164, %s165
      %p174 = scmp.eq.s32.totalorder %s23, 0
      %p175 = por %p173, %p174
      %p176 = scmp.ne.s32.totalorder %s164, %s165
      %p177 = scmp.eq.s32.totalorder %s24, 1
      %p178 = por %p176, %p177
      %p180 = scmp.ne.s32.totalorder %s165, %s179
      %p181 = scmp.eq.s32.totalorder %s24, 0
      %p182 = por %p180, %p181
      %s184 = sadd.s32 %s183, 1
      %p187 = scmp.eq.s32.totalorder %s18, 1
      %p188 = scmp.ne.s32.totalorder %s183, %s185
      %p189 = scmp.eq.s32.totalorder %s18, 0
      %p190 = por %p188, %p189
      %p191 = scmp.ne.s32.totalorder %s183, %s185
      %p192 = scmp.eq.s32.totalorder %s23, 1
      %p193 = por %p191, %p192
      %p194 = scmp.ne.s32.totalorder %s185, %s186
      %p195 = scmp.eq.s32.totalorder %s23, 0
      %p196 = por %p194, %p195
      %p197 = scmp.ne.s32.totalorder %s185, %s186
      %p198 = scmp.eq.s32.totalorder %s24, 1
      %p199 = por %p197, %p198
      %p201 = scmp.ne.s32.totalorder %s186, %s200
      %p202 = scmp.eq.s32.totalorder %s24, 0
      %p203 = por %p201, %p202
      %s204 = ssub.s32 %s18, %s25
      %p205 = scmp.eq.s32.totalorder %s204, 0
      %s207 = sadd.s32 %s206, 1
      %s208 = scalar_select %p205, %s206, %s207
      %p211 = pneg %p205
      %p212 = scmp.eq.s32.totalorder %s18, 1
      %p213 = por %p211, %p212
      %p214 = scmp.ne.s32.totalorder %s206, %s209
      %p215 = scmp.eq.s32.totalorder %s18, 0
      %p216 = por %p214, %p215
      %p217 = scmp.ne.s32.totalorder %s206, %s209
      %p218 = scmp.eq.s32.totalorder %s23, 1
      %p219 = por %p217, %p218
      %p220 = scmp.ne.s32.totalorder %s209, %s210
      %p221 = scmp.eq.s32.totalorder %s23, 0
      %p222 = por %p220, %p221
      %p223 = scmp.ne.s32.totalorder %s209, %s210
      %p224 = scmp.eq.s32.totalorder %s24, 1
      %p225 = por %p223, %p224
      %p227 = scmp.ne.s32.totalorder %s210, %s226
      %p228 = scmp.eq.s32.totalorder %s24, 0
      %p229 = por %p227, %p228
      %p230 = scmp.le.s32.totalorder 1, %s18
      %p231 = scmp.lt.s32.totalorder %s18, 3
      %p232 = pnand %p230, %p231
      %p233 = pneg %p232
      // Predicated region
      $region9: #{critic_forward.1} parent=5 // pred_check
        _
      $region10: #{critic_forward.1} parent=5 // pred_check_branch
        %235 = sbr.rel (%p232) target = $region12
      $region11: #{critic_forward.1} parent=5 // pred_region
        %s236 = ssub.s32 %s18, 1
        // Predicated region
        $region13: #{critic_forward.1} parent=11 // pred_check
          %p237 = pneg %p91
        $region14: #{critic_forward.1} parent=11 // pred_check_branch
          %239 = sbr.rel (%p237) target = $region16
        $region15: #{critic_forward.1} parent=11 // pred_region
          _
        $region16: #{critic_forward.1} parent=11 // pred_fallthru
          _
        // Predicated region
        $region17: #{critic_forward.1} parent=11 // pred_check
          %p240 = pneg %p112
        $region18: #{critic_forward.1} parent=11 // pred_check_branch
          %242 = sbr.rel (%p240) target = $region20
        $region19: #{critic_forward.1} parent=11 // pred_region
          _
        $region20: #{critic_forward.1} parent=11 // pred_fallthru
          _
        // Predicated region
        $region21: #{critic_forward.1} parent=11 // pred_check
          %p243 = pneg %p133
        $region22: #{critic_forward.1} parent=11 // pred_check_branch
          %245 = sbr.rel (%p243) target = $region24
        $region23: #{critic_forward.1} parent=11 // pred_region
          _
        $region24: #{critic_forward.1} parent=11 // pred_fallthru
          _
        // Predicated region
        $region25: #{critic_forward.1} parent=11 // pred_check
          %p246 = pneg %p154
        $region26: #{critic_forward.1} parent=11 // pred_check_branch
          %248 = sbr.rel (%p246) target = $region28
        $region27: #{critic_forward.1} parent=11 // pred_region
          _
        $region28: #{critic_forward.1} parent=11 // pred_fallthru
          _
        // Predicated region
        $region29: #{critic_forward.1} parent=11 // pred_check
          %p249 = pneg %p175
        $region30: #{critic_forward.1} parent=11 // pred_check_branch
          %251 = sbr.rel (%p249) target = $region32
        $region31: #{critic_forward.1} parent=11 // pred_region
          _
        $region32: #{critic_forward.1} parent=11 // pred_fallthru
          _
        // Predicated region
        $region33: #{critic_forward.1} parent=11 // pred_check
          %p252 = pneg %p196
        $region34: #{critic_forward.1} parent=11 // pred_check_branch
          %254 = sbr.rel (%p252) target = $region36
        $region35: #{critic_forward.1} parent=11 // pred_region
          _
        $region36: #{critic_forward.1} parent=11 // pred_fallthru
          _
      $region12: #{critic_forward.1} parent=5 // pred_fallthru
        _
      %p255 = scmp.lt.s32.totalorder %s18, 2
      // Predicated region
      $region37: #{critic_forward.1} parent=5 // pred_check
        %p256 = pneg %p255
      $region38: #{critic_forward.1} parent=5 // pred_check_branch
        %258 = sbr.rel (%p256) target = $region40
      $region39: #{critic_forward.1} parent=5 // pred_region
        // Predicated region
        $region41: #{critic_forward.1} parent=39 // pred_check
          %p259 = pneg %p38
        $region42: #{critic_forward.1} parent=39 // pred_check_branch
          %261 = sbr.rel (%p259) target = $region44
        $region43: #{critic_forward.1} parent=39 // pred_region
          %s262 = smul.u32 16, %s18
          %p263 = scmp.lt.s32.totalorder %s262, 31
          %s264 = scalar_select %p263, %s262, 31
          %s265 = smul.addr %s264, 8
          %s266 = scalar_lea.vmem %s0, %s265
          %s267 = smul.u32 16, %s18
        $region44: #{critic_forward.1} parent=39 // pred_fallthru
          _
        // Predicated region
        $region45: #{critic_forward.1} parent=39 // pred_check
          %p268 = pneg %p64
        $region46: #{critic_forward.1} parent=39 // pred_check_branch
          %270 = sbr.rel (%p268) target = $region48
        $region47: #{critic_forward.1} parent=39 // pred_region
          %s271 = smul.u32 16, %s18
          %p272 = scmp.lt.s32.totalorder %s271, 31
          %s273 = scalar_select %p272, %s271, 31
          %s274 = smul.addr %s273, 8
          %s275 = scalar_lea.vmem %s1, %s274
          %s276 = smul.u32 16, %s18
        $region48: #{critic_forward.1} parent=39 // pred_fallthru
          _
      $region40: #{critic_forward.1} parent=5 // pred_fallthru
        _
      %p277 = scmp.le.s32.totalorder 1, %s18
      %p278 = scmp.lt.s32.totalorder %s18, 3
      %p279 = pnand %p277, %p278
      %p280 = pneg %p279
      // Predicated region
      $region49: #{critic_forward.1} parent=5 // pred_check
        _
      $region50: #{critic_forward.1} parent=5 // pred_check_branch
        %282 = sbr.rel (%p279) target = $region52
      $region51: #{critic_forward.1} parent=5 // pred_region
        %s283 = ssub.s32 %s18, 1
        %s284 = smul.u32 16, %s23
        %p285 = scmp.lt.s32.totalorder %s284, 31
        %s286 = scalar_select %p285, %s284, 31
        %s287 = smul.addr %s286, 8
        %s288 = scalar_lea.vmem %s0, %s287
        %p289 = pneg %p44
        %p290 = pneg %p41
        %s291 = smul.u32 16, %s23
        %p292 = scmp.lt.s32.totalorder %s291, 31
        %s293 = scalar_select %p292, %s291, 31
        %s294 = smul.addr %s293, 8
        %s295 = scalar_lea.vmem %s1, %s294
        %p296 = pneg %p70
        %p297 = pneg %p67
        %p298 = pneg %p91
        %p299 = pneg %p88
        %p300 = pneg %p112
        %p301 = pneg %p109
        %p302 = pneg %p133
        %p303 = pneg %p130
        %p304 = pneg %p154
        %p305 = pneg %p151
        %p306 = pneg %p175
        %p307 = pneg %p172
        %p308 = pneg %p196
        %p309 = pneg %p193
        %p310 = pneg %p222
        %p311 = pneg %p219
        %s312 = sand.u32 %s209, 1
        %s313 = scalar_lea.sflag [#allocation4], %s312
        %s314 = sand.u32 %s209, 1
        %s315 = scalar_lea.vmem [#allocation3], %s314
        %s316 = smul.u32 16, %s23
        %p317 = scmp.lt.s32.totalorder %s316, 31
        %s318 = scalar_select %p317, %s316, 31
        %s319 = smul.addr %s318, 8
        %s320 = scalar_lea.vmem %s0, %s319
        %s321 = smul.u32 16, %s23
        %s322 = smul.u32 16, %s23
        %p323 = scmp.lt.s32.totalorder %s322, 31
        %s324 = scalar_select %p323, %s322, 31
        %s325 = smul.addr %s324, 8
        %s326 = scalar_lea.vmem %s1, %s325
        %s327 = smul.u32 16, %s23
        %v328 = vld [vmem:[%s320] sm:$0xff]
        %v329 = vld [vmem:[%s320 + $0x8] sm:$0xff]
        %v330 = vld [vmem:[%s320 + $0x10] sm:$0xff]
        %v331 = vld [vmem:[%s320 + $0x18] sm:$0xff]
        %v332 = vld [vmem:[%s320 + $0x20] sm:$0xff]
        %v333 = vld [vmem:[%s320 + $0x28] sm:$0xff]
        %v334 = vld [vmem:[%s320 + $0x30] sm:$0xff]
        %v335 = vld [vmem:[%s320 + $0x38] sm:$0xff]
        %v336 = vld [vmem:[%s320 + $0x40] sm:$0xff]
        %v337 = vld [vmem:[%s320 + $0x48] sm:$0xff]
        %v338 = vld [vmem:[%s320 + $0x50] sm:$0xff]
        %v339 = vld [vmem:[%s320 + $0x58] sm:$0xff]
        %v340 = vld [vmem:[%s320 + $0x60] sm:$0xff]
        %v341 = vld [vmem:[%s320 + $0x68] sm:$0xff]
        %v342 = vld [vmem:[%s320 + $0x70] sm:$0xff]
        %v343 = vld [vmem:[%s320 + $0x78] sm:$0xff]
        %v344 = vld [vmem:[%s326] sm:$0xff]
        %v345 = vld [vmem:[%s326 + $0x8] sm:$0xff]
        %v346 = vld [vmem:[%s326 + $0x10] sm:$0xff]
        %v347 = vld [vmem:[%s326 + $0x18] sm:$0xff]
        %v348 = vld [vmem:[%s326 + $0x20] sm:$0xff]
        %v349 = vld [vmem:[%s326 + $0x28] sm:$0xff]
        %v350 = vld [vmem:[%s326 + $0x30] sm:$0xff]
        %v351 = vld [vmem:[%s326 + $0x38] sm:$0xff]
        %v352 = vld [vmem:[%s326 + $0x40] sm:$0xff]
        %v353 = vld [vmem:[%s326 + $0x48] sm:$0xff]
        %v354 = vld [vmem:[%s326 + $0x50] sm:$0xff]
        %v355 = vld [vmem:[%s326 + $0x58] sm:$0xff]
        %v356 = vld [vmem:[%s326 + $0x60] sm:$0xff]
        %v357 = vld [vmem:[%s326 + $0x68] sm:$0xff]
        %v358 = vld [vmem:[%s326 + $0x70] sm:$0xff]
        %v359 = vld [vmem:[%s326 + $0x78] sm:$0xff]
        %v360 = vld [vmem:[%s2] sm:$0xff]
        %v361 = vld [vmem:[%s2 + $0x8] sm:$0xff]
        %v362 = vld [vmem:[%s2 + $0x10] sm:$0xff]
        %vm363 = vcmask 64512
        %v365 = vsel %vm363, %v344, 0
        %v368 = vsel %vm363, %v345, 0
        %v371 = vsel %vm363, %v346, 0
        %v374 = vsel %vm363, %v347, 0
        %v377 = vsel %vm363, %v348, 0
        %v380 = vsel %vm363, %v349, 0
        %v383 = vsel %vm363, %v350, 0
        %v386 = vsel %vm363, %v351, 0
        %v389 = vsel %vm363, %v352, 0
        %v392 = vsel %vm363, %v353, 0
        %v395 = vsel %vm363, %v354, 0
        %v398 = vsel %vm363, %v355, 0
        %v401 = vsel %vm363, %v356, 0
        %v404 = vsel %vm363, %v357, 0
        %v407 = vsel %vm363, %v358, 0
        %v410 = vsel %vm363, %v359, 0
        %412 = vmatprep.subr.mxu0 0.0
        %413 = vmatpush1.msra.mxu0 %v362
        %414 = vmatprep.subr.mxu0 0.0
        %415 = vmatpush1.msra.mxu0 0.0
        %416 = vmatprep.subr.mxu0 0.0
        %417 = vmatpush1.msra.mxu0 0.0
        %418 = vmatprep.subr.mxu0 0.0
        %419 = vmatpush1.msra.mxu0 0.0
        %420 = vmatprep.subr.mxu0 0.0
        %421 = vmatpush1.msra.mxu0 0.0
        %422 = vmatprep.subr.mxu0 0.0
        %423 = vmatpush1.msra.mxu0 0.0
        %424 = vmatprep.subr.mxu0 0.0
        %425 = vmatpush1.msra.mxu0 0.0
        %426 = vmatprep.subr.mxu0 0.0
        %427 = vmatpush1.msra.mxu0 0.0
        %428 = vmatprep.subr.mxu0 0.0
        %429 = vmatpush1.msra.mxu0 0.0
        %430 = vmatprep.subr.mxu0 0.0
        %431 = vmatpush1.msra.mxu0 0.0
        %432 = vmatprep.subr.mxu0 0.0
        %433 = vmatpush1.msra.mxu0 0.0
        %434 = vmatprep.subr.mxu0 0.0
        %435 = vmatpush1.msra.mxu0 0.0
        %436 = vmatprep.subr.mxu0 0.0
        %437 = vmatpush1.msra.mxu0 0.0
        %438 = vmatprep.subr.mxu0 0.0
        %439 = vmatpush1.msra.mxu0 0.0
        %440 = vmatprep.subr.mxu0 0.0
        %441 = vmatpush1.msra.mxu0 0.0
        %442 = vmatprep.subr.mxu0 0.0
        %443 = vmatpush1.msra.mxu0 0.0
        %444 = vmatprep.subr.mxu0 0.0
        %445 = vmatpush1.msra.mxu0 0.0
        %446 = vmatprep.subr.mxu0 0.0
        %447 = vmatpush1.msra.mxu0 0.0
        %448 = vmatprep.subr.mxu0 0.0
        %449 = vmatpush1.msra.mxu0 0.0
        %450 = vmatprep.subr.mxu0 0.0
        %451 = vmatpush1.msra.mxu0 0.0
        %452 = vmatprep.subr.mxu0 0.0
        %453 = vmatpush1.msra.mxu0 0.0
        %454 = vmatprep.subr.mxu0 0.0
        %455 = vmatpush1.msra.mxu0 0.0
        %456 = vmatprep.subr.mxu0 0.0
        %457 = vmatpush1.msra.mxu0 0.0
        %458 = vmatprep.subr.mxu0 0.0
        %459 = vmatpush1.msra.mxu0 0.0
        %460 = vmatprep.subr.mxu0 0.0
        %461 = vmatpush1.msra.mxu0 0.0
        %462 = vmatprep.subr.mxu0 0.0
        %463 = vmatpush1.msra.mxu0 0.0
        %464 = vmatprep.subr.mxu0 0.0
        %465 = vmatpush1.msra.mxu0 0.0
        %466 = vmatprep.subr.mxu0 0.0
        %467 = vmatpush1.msra.mxu0 0.0
        %468 = vmatprep.subr.mxu0 0.0
        %469 = vmatpush1.msra.mxu0 0.0
        %470 = vmatprep.subr.mxu0 0.0
        %471 = vmatpush1.msra.mxu0 0.0
        %472 = vmatprep.subr.mxu0 0.0
        %473 = vmatpush1.msra.mxu0 0.0
        %474 = vmatprep.subr.mxu0 0.0
        %475 = vmatpush1.msra.mxu0 0.0
        %476 = vmatprep.mubr.f32.mxu0 0.0
        %477 = vmatmul.mubr.f32.gmra.mrb[0].mxu0 %v365
        %v478 = vpop.f32.mrb[0].mxu0
        %v479 = vadd.f32 0.0, %v478
        %v480 = vpop.f32.mrb[0].mxu0
        %481 = vmatprep.mubr.f32.mxu0 0.0
        %482 = vmatmul.mubr.f32.gmra.mrb[0].mxu0 %v368
        %v483 = vpop.f32.mrb[0].mxu0
        %v484 = vadd.f32 0.0, %v483
        %v485 = vpop.f32.mrb[0].mxu0
        %486 = vmatprep.mubr.f32.mxu0 0.0
        %487 = vmatmul.mubr.f32.gmra.mrb[0].mxu0 %v371
        %v488 = vpop.f32.mrb[0].mxu0
        %v489 = vadd.f32 0.0, %v488
        %v490 = vpop.f32.mrb[0].mxu0
        %491 = vmatprep.mubr.f32.mxu0 0.0
        %492 = vmatmul.mubr.f32.gmra.mrb[0].mxu0 %v374
        %v493 = vpop.f32.mrb[0].mxu0
        %v494 = vadd.f32 0.0, %v493
        %v495 = vpop.f32.mrb[0].mxu0
        %496 = vmatprep.mubr.f32.mxu0 0.0
        %497 = vmatmul.mubr.f32.gmra.mrb[0].mxu0 %v377
        %v498 = vpop.f32.mrb[0].mxu0
        %v499 = vadd.f32 0.0, %v498
        %v500 = vpop.f32.mrb[0].mxu0
        %501 = vmatprep.mubr.f32.mxu0 0.0
        %502 = vmatmul.mubr.f32.gmra.mrb[0].mxu0 %v380
        %v503 = vpop.f32.mrb[0].mxu0
        %v504 = vadd.f32 0.0, %v503
        %v505 = vpop.f32.mrb[0].mxu0
        %506 = vmatprep.mubr.f32.mxu0 0.0
        %507 = vmatmul.mubr.f32.gmra.mrb[0].mxu0 %v383
        %v508 = vpop.f32.mrb[0].mxu0
        %v509 = vadd.f32 0.0, %v508
        %v510 = vpop.f32.mrb[0].mxu0
        %511 = vmatprep.mubr.f32.mxu0 0.0
        %512 = vmatmul.mubr.f32.gmra.mrb[0].mxu0 %v386
        %v513 = vpop.f32.mrb[0].mxu0
        %v514 = vadd.f32 0.0, %v513
        %v515 = vpop.f32.mrb[0].mxu0
        %516 = vmatprep.mubr.f32.mxu0 0.0
        %517 = vmatmul.mubr.f32.gmra.mrb[0].mxu0 %v389
        %v518 = vpop.f32.mrb[0].mxu0
        %v519 = vadd.f32 0.0, %v518
        %v520 = vpop.f32.mrb[0].mxu0
        %521 = vmatprep.mubr.f32.mxu0 0.0
        %522 = vmatmul.mubr.f32.gmra.mrb[0].mxu0 %v392
        %v523 = vpop.f32.mrb[0].mxu0
        %v524 = vadd.f32 0.0, %v523
        %v525 = vpop.f32.mrb[0].mxu0
        %526 = vmatprep.mubr.f32.mxu0 0.0
        %527 = vmatmul.mubr.f32.gmra.mrb[0].mxu0 %v395
        %v528 = vpop.f32.mrb[0].mxu0
        %v529 = vadd.f32 0.0, %v528
        %v530 = vpop.f32.mrb[0].mxu0
        %531 = vmatprep.mubr.f32.mxu0 0.0
        %532 = vmatmul.mubr.f32.gmra.mrb[0].mxu0 %v398
        %v533 = vpop.f32.mrb[0].mxu0
        %v534 = vadd.f32 0.0, %v533
        %v535 = vpop.f32.mrb[0].mxu0
        %536 = vmatprep.mubr.f32.mxu0 0.0
        %537 = vmatmul.mubr.f32.gmra.mrb[0].mxu0 %v401
        %v538 = vpop.f32.mrb[0].mxu0
        %v539 = vadd.f32 0.0, %v538
        %v540 = vpop.f32.mrb[0].mxu0
        %541 = vmatprep.mubr.f32.mxu0 0.0
        %542 = vmatmul.mubr.f32.gmra.mrb[0].mxu0 %v404
        %v543 = vpop.f32.mrb[0].mxu0
        %v544 = vadd.f32 0.0, %v543
        %v545 = vpop.f32.mrb[0].mxu0
        %546 = vmatprep.mubr.f32.mxu0 0.0
        %547 = vmatmul.mubr.f32.gmra.mrb[0].mxu0 %v407
        %v548 = vpop.f32.mrb[0].mxu0
        %v549 = vadd.f32 0.0, %v548
        %v550 = vpop.f32.mrb[0].mxu0
        %551 = vmatprep.mubr.f32.mxu0 0.0
        %552 = vmatmul.mubr.f32.gmra.mrb[0].mxu0 %v410
        %v553 = vpop.f32.mrb[0].mxu0
        %v554 = vadd.f32 0.0, %v553
        %v555 = vpop.f32.mrb[0].mxu0
        %556 = vdwg.mxu0
        %vm557 = vcmask 130048
        %v559 = vsel %vm557, %v328, 0
        %v562 = vsel %vm557, %v329, 0
        %v565 = vsel %vm557, %v330, 0
        %v568 = vsel %vm557, %v331, 0
        %v571 = vsel %vm557, %v332, 0
        %v574 = vsel %vm557, %v333, 0
        %v577 = vsel %vm557, %v334, 0
        %v580 = vsel %vm557, %v335, 0
        %v583 = vsel %vm557, %v336, 0
        %v586 = vsel %vm557, %v337, 0
        %v589 = vsel %vm557, %v338, 0
        %v592 = vsel %vm557, %v339, 0
        %v595 = vsel %vm557, %v340, 0
        %v598 = vsel %vm557, %v341, 0
        %v601 = vsel %vm557, %v342, 0
        %v604 = vsel %vm557, %v343, 0
        %606 = vmatprep.subr.mxu0 0.0
        %607 = vmatpush1.msra.mxu0 %v360
        %608 = vmatprep.subr.mxu0 0.0
        %609 = vmatpush1.msra.mxu0 %v361
        %610 = vmatprep.subr.mxu0 0.0
        %611 = vmatpush1.msra.mxu0 0.0
        %612 = vmatprep.subr.mxu0 0.0
        %613 = vmatpush1.msra.mxu0 0.0
        %614 = vmatprep.subr.mxu0 0.0
        %615 = vmatpush1.msra.mxu0 0.0
        %616 = vmatprep.subr.mxu0 0.0
        %617 = vmatpush1.msra.mxu0 0.0
        %618 = vmatprep.subr.mxu0 0.0
        %619 = vmatpush1.msra.mxu0 0.0
        %620 = vmatprep.subr.mxu0 0.0
        %621 = vmatpush1.msra.mxu0 0.0
        %622 = vmatprep.subr.mxu0 0.0
        %623 = vmatpush1.msra.mxu0 0.0
        %624 = vmatprep.subr.mxu0 0.0
        %625 = vmatpush1.msra.mxu0 0.0
        %626 = vmatprep.subr.mxu0 0.0
        %627 = vmatpush1.msra.mxu0 0.0
        %628 = vmatprep.subr.mxu0 0.0
        %629 = vmatpush1.msra.mxu0 0.0
        %630 = vmatprep.subr.mxu0 0.0
        %631 = vmatpush1.msra.mxu0 0.0
        %632 = vmatprep.subr.mxu0 0.0
        %633 = vmatpush1.msra.mxu0 0.0
        %634 = vmatprep.subr.mxu0 0.0
        %635 = vmatpush1.msra.mxu0 0.0
        %636 = vmatprep.subr.mxu0 0.0
        %637 = vmatpush1.msra.mxu0 0.0
        %638 = vmatprep.subr.mxu0 0.0
        %639 = vmatpush1.msra.mxu0 0.0
        %640 = vmatprep.subr.mxu0 0.0
        %641 = vmatpush1.msra.mxu0 0.0
        %642 = vmatprep.subr.mxu0 0.0
        %643 = vmatpush1.msra.mxu0 0.0
        %644 = vmatprep.subr.mxu0 0.0
        %645 = vmatpush1.msra.mxu0 0.0
        %646 = vmatprep.subr.mxu0 0.0
        %647 = vmatpush1.msra.mxu0 0.0
        %648 = vmatprep.subr.mxu0 0.0
        %649 = vmatpush1.msra.mxu0 0.0
        %650 = vmatprep.subr.mxu0 0.0
        %651 = vmatpush1.msra.mxu0 0.0
        %652 = vmatprep.subr.mxu0 0.0
        %653 = vmatpush1.msra.mxu0 0.0
        %654 = vmatprep.subr.mxu0 0.0
        %655 = vmatpush1.msra.mxu0 0.0
        %656 = vmatprep.subr.mxu0 0.0
        %657 = vmatpush1.msra.mxu0 0.0
        %658 = vmatprep.subr.mxu0 0.0
        %659 = vmatpush1.msra.mxu0 0.0
        %660 = vmatprep.subr.mxu0 0.0
        %661 = vmatpush1.msra.mxu0 0.0
        %662 = vmatprep.subr.mxu0 0.0
        %663 = vmatpush1.msra.mxu0 0.0
        %664 = vmatprep.subr.mxu0 0.0
        %665 = vmatpush1.msra.mxu0 0.0
        %666 = vmatprep.subr.mxu0 0.0
        %667 = vmatpush1.msra.mxu0 0.0
        %668 = vmatprep.subr.mxu0 0.0
        %669 = vmatpush1.msra.mxu0 0.0
        %670 = vmatprep.mubr.f32.mxu0 0.0
        %671 = vmatmul.mubr.f32.gmra.mrb[0].mxu0 %v559
        %v672 = vpop.f32.mrb[0].mxu0
        %v673 = vadd.f32 %v479, %v672
        %v674 = vpop.f32.mrb[0].mxu0
        %675 = vmatprep.mubr.f32.mxu0 0.0
        %676 = vmatmul.mubr.f32.gmra.mrb[0].mxu0 %v562
        %v677 = vpop.f32.mrb[0].mxu0
        %v678 = vadd.f32 %v484, %v677
        %v679 = vpop.f32.mrb[0].mxu0
        %680 = vmatprep.mubr.f32.mxu0 0.0
        %681 = vmatmul.mubr.f32.gmra.mrb[0].mxu0 %v565
        %v682 = vpop.f32.mrb[0].mxu0
        %v683 = vadd.f32 %v489, %v682
        %v684 = vpop.f32.mrb[0].mxu0
        %685 = vmatprep.mubr.f32.mxu0 0.0
        %686 = vmatmul.mubr.f32.gmra.mrb[0].mxu0 %v568
        %v687 = vpop.f32.mrb[0].mxu0
        %v688 = vadd.f32 %v494, %v687
        %v689 = vpop.f32.mrb[0].mxu0
        %690 = vmatprep.mubr.f32.mxu0 0.0
        %691 = vmatmul.mubr.f32.gmra.mrb[0].mxu0 %v571
        %v692 = vpop.f32.mrb[0].mxu0
        %v693 = vadd.f32 %v499, %v692
        %v694 = vpop.f32.mrb[0].mxu0
        %695 = vmatprep.mubr.f32.mxu0 0.0
        %696 = vmatmul.mubr.f32.gmra.mrb[0].mxu0 %v574
        %v697 = vpop.f32.mrb[0].mxu0
        %v698 = vadd.f32 %v504, %v697
        %v699 = vpop.f32.mrb[0].mxu0
        %700 = vmatprep.mubr.f32.mxu0 0.0
        %701 = vmatmul.mubr.f32.gmra.mrb[0].mxu0 %v577
        %v702 = vpop.f32.mrb[0].mxu0
        %v703 = vadd.f32 %v509, %v702
        %v704 = vpop.f32.mrb[0].mxu0
        %705 = vmatprep.mubr.f32.mxu0 0.0
        %706 = vmatmul.mubr.f32.gmra.mrb[0].mxu0 %v580
        %v707 = vpop.f32.mrb[0].mxu0
        %v708 = vadd.f32 %v514, %v707
        %v709 = vpop.f32.mrb[0].mxu0
        %710 = vmatprep.mubr.f32.mxu0 0.0
        %711 = vmatmul.mubr.f32.gmra.mrb[0].mxu0 %v583
        %v712 = vpop.f32.mrb[0].mxu0
        %v713 = vadd.f32 %v519, %v712
        %v714 = vpop.f32.mrb[0].mxu0
        %715 = vmatprep.mubr.f32.mxu0 0.0
        %716 = vmatmul.mubr.f32.gmra.mrb[0].mxu0 %v586
        %v717 = vpop.f32.mrb[0].mxu0
        %v718 = vadd.f32 %v524, %v717
        %v719 = vpop.f32.mrb[0].mxu0
        %720 = vmatprep.mubr.f32.mxu0 0.0
        %721 = vmatmul.mubr.f32.gmra.mrb[0].mxu0 %v589
        %v722 = vpop.f32.mrb[0].mxu0
        %v723 = vadd.f32 %v529, %v722
        %v724 = vpop.f32.mrb[0].mxu0
        %725 = vmatprep.mubr.f32.mxu0 0.0
        %726 = vmatmul.mubr.f32.gmra.mrb[0].mxu0 %v592
        %v727 = vpop.f32.mrb[0].mxu0
        %v728 = vadd.f32 %v534, %v727
        %v729 = vpop.f32.mrb[0].mxu0
        %730 = vmatprep.mubr.f32.mxu0 0.0
        %731 = vmatmul.mubr.f32.gmra.mrb[0].mxu0 %v595
        %v732 = vpop.f32.mrb[0].mxu0
        %v733 = vadd.f32 %v539, %v732
        %v734 = vpop.f32.mrb[0].mxu0
        %735 = vmatprep.mubr.f32.mxu0 0.0
        %736 = vmatmul.mubr.f32.gmra.mrb[0].mxu0 %v598
        %v737 = vpop.f32.mrb[0].mxu0
        %v738 = vadd.f32 %v544, %v737
        %v739 = vpop.f32.mrb[0].mxu0
        %740 = vmatprep.mubr.f32.mxu0 0.0
        %741 = vmatmul.mubr.f32.gmra.mrb[0].mxu0 %v601
        %v742 = vpop.f32.mrb[0].mxu0
        %v743 = vadd.f32 %v549, %v742
        %v744 = vpop.f32.mrb[0].mxu0
        %745 = vmatprep.mubr.f32.mxu0 0.0
        %746 = vmatmul.mubr.f32.gmra.mrb[0].mxu0 %v604
        %v747 = vpop.f32.mrb[0].mxu0
        %v748 = vadd.f32 %v554, %v747
        %v749 = vpop.f32.mrb[0].mxu0
        %750 = vdwg.mxu0
        %v751 = vld [vmem:[%s3] sm:$0x1]
        %v753 = vlaneseq
        %v754 = vshrl.u32 %v753, 7
        %v755 = vsub.s32 0, %v754
        %v756 = vrot.slane %v751, %v755
        %v758 = vadd.f32 %v673, %v756
        %v759 = vadd.f32 %v678, %v756
        %v760 = vadd.f32 %v683, %v756
        %v761 = vadd.f32 %v688, %v756
        %v762 = vadd.f32 %v693, %v756
        %v763 = vadd.f32 %v698, %v756
        %v764 = vadd.f32 %v703, %v756
        %v765 = vadd.f32 %v708, %v756
        %v766 = vadd.f32 %v713, %v756
        %v767 = vadd.f32 %v718, %v756
        %v768 = vadd.f32 %v723, %v756
        %v769 = vadd.f32 %v728, %v756
        %v770 = vadd.f32 %v733, %v756
        %v771 = vadd.f32 %v738, %v756
        %v772 = vadd.f32 %v743, %v756
        %v773 = vadd.f32 %v748, %v756
        %v774 = vmul.f32 %v758, 0.01
        %v775 = vmul.f32 %v759, 0.01
        %v776 = vmul.f32 %v760, 0.01
        %v777 = vmul.f32 %v761, 0.01
        %v778 = vmul.f32 %v762, 0.01
        %v779 = vmul.f32 %v763, 0.01
        %v780 = vmul.f32 %v764, 0.01
        %v781 = vmul.f32 %v765, 0.01
        %v782 = vmul.f32 %v766, 0.01
        %v783 = vmul.f32 %v767, 0.01
        %v784 = vmul.f32 %v768, 0.01
        %v785 = vmul.f32 %v769, 0.01
        %v786 = vmul.f32 %v770, 0.01
        %v787 = vmul.f32 %v771, 0.01
        %v788 = vmul.f32 %v772, 0.01
        %v789 = vmul.f32 %v773, 0.01
        %v790 = vmax.f32 %v758, %v774
        %v791 = vmax.f32 %v759, %v775
        %v792 = vmax.f32 %v760, %v776
        %v793 = vmax.f32 %v761, %v777
        %v794 = vmax.f32 %v762, %v778
        %v795 = vmax.f32 %v763, %v779
        %v796 = vmax.f32 %v764, %v780
        %v797 = vmax.f32 %v765, %v781
        %v798 = vmax.f32 %v766, %v782
        %v799 = vmax.f32 %v767, %v783
        %v800 = vmax.f32 %v768, %v784
        %v801 = vmax.f32 %v769, %v785
        %v802 = vmax.f32 %v770, %v786
        %v803 = vmax.f32 %v771, %v787
        %v804 = vmax.f32 %v772, %v788
        %v805 = vmax.f32 %v773, %v789
        %v806 = vld [vmem:[%s4] sm:$0xff]
        %v807 = vld [vmem:[%s4 + $0x8] sm:$0xff]
        %v808 = vld [vmem:[%s4 + $0x10] sm:$0xff]
        %v809 = vld [vmem:[%s4 + $0x18] sm:$0xff]
        %v810 = vld [vmem:[%s5] sm:$0x1]
        %v812 = vlaneseq
        %v813 = vshrl.u32 %v812, 7
        %v814 = vsub.s32 0, %v813
        %v815 = vrot.slane %v810, %v814
        %vm817 = vcmask 261120
        %v819 = vsel %vm817, %v790, 0
        %v822 = vsel %vm817, %v791, 0
        %v825 = vsel %vm817, %v792, 0
        %v828 = vsel %vm817, %v793, 0
        %v831 = vsel %vm817, %v794, 0
        %v834 = vsel %vm817, %v795, 0
        %v837 = vsel %vm817, %v796, 0
        %v840 = vsel %vm817, %v797, 0
        %v843 = vsel %vm817, %v798, 0
        %v846 = vsel %vm817, %v799, 0
        %v849 = vsel %vm817, %v800, 0
        %v852 = vsel %vm817, %v801, 0
        %v855 = vsel %vm817, %v802, 0
        %v858 = vsel %vm817, %v803, 0
        %v861 = vsel %vm817, %v804, 0
        %v864 = vsel %vm817, %v805, 0
        %866 = vmatprep.subr.mxu0 0.0
        %867 = vmatpush1.msra.mxu0 %v806
        %868 = vmatprep.subr.mxu0 0.0
        %869 = vmatpush1.msra.mxu0 %v807
        %870 = vmatprep.subr.mxu0 0.0
        %871 = vmatpush1.msra.mxu0 %v808
        %872 = vmatprep.subr.mxu0 0.0
        %873 = vmatpush1.msra.mxu0 %v809
        %874 = vmatprep.subr.mxu0 0.0
        %875 = vmatpush1.msra.mxu0 0.0
        %876 = vmatprep.subr.mxu0 0.0
        %877 = vmatpush1.msra.mxu0 0.0
        %878 = vmatprep.subr.mxu0 0.0
        %879 = vmatpush1.msra.mxu0 0.0
        %880 = vmatprep.subr.mxu0 0.0
        %881 = vmatpush1.msra.mxu0 0.0
        %882 = vmatprep.subr.mxu0 0.0
        %883 = vmatpush1.msra.mxu0 0.0
        %884 = vmatprep.subr.mxu0 0.0
        %885 = vmatpush1.msra.mxu0 0.0
        %886 = vmatprep.subr.mxu0 0.0
        %887 = vmatpush1.msra.mxu0 0.0
        %888 = vmatprep.subr.mxu0 0.0
        %889 = vmatpush1.msra.mxu0 0.0
        %890 = vmatprep.subr.mxu0 0.0
        %891 = vmatpush1.msra.mxu0 0.0
        %892 = vmatprep.subr.mxu0 0.0
        %893 = vmatpush1.msra.mxu0 0.0
        %894 = vmatprep.subr.mxu0 0.0
        %895 = vmatpush1.msra.mxu0 0.0
        %896 = vmatprep.subr.mxu0 0.0
        %897 = vmatpush1.msra.mxu0 0.0
        %898 = vmatprep.subr.mxu0 0.0
        %899 = vmatpush1.msra.mxu0 0.0
        %900 = vmatprep.subr.mxu0 0.0
        %901 = vmatpush1.msra.mxu0 0.0
        %902 = vmatprep.subr.mxu0 0.0
        %903 = vmatpush1.msra.mxu0 0.0
        %904 = vmatprep.subr.mxu0 0.0
        %905 = vmatpush1.msra.mxu0 0.0
        %906 = vmatprep.subr.mxu0 0.0
        %907 = vmatpush1.msra.mxu0 0.0
        %908 = vmatprep.subr.mxu0 0.0
        %909 = vmatpush1.msra.mxu0 0.0
        %910 = vmatprep.subr.mxu0 0.0
        %911 = vmatpush1.msra.mxu0 0.0
        %912 = vmatprep.subr.mxu0 0.0
        %913 = vmatpush1.msra.mxu0 0.0
        %914 = vmatprep.subr.mxu0 0.0
        %915 = vmatpush1.msra.mxu0 0.0
        %916 = vmatprep.subr.mxu0 0.0
        %917 = vmatpush1.msra.mxu0 0.0
        %918 = vmatprep.subr.mxu0 0.0
        %919 = vmatpush1.msra.mxu0 0.0
        %920 = vmatprep.subr.mxu0 0.0
        %921 = vmatpush1.msra.mxu0 0.0
        %922 = vmatprep.subr.mxu0 0.0
        %923 = vmatpush1.msra.mxu0 0.0
        %924 = vmatprep.subr.mxu0 0.0
        %925 = vmatpush1.msra.mxu0 0.0
        %926 = vmatprep.subr.mxu0 0.0
        %927 = vmatpush1.msra.mxu0 0.0
        %928 = vmatprep.subr.mxu0 0.0
        %929 = vmatpush1.msra.mxu0 0.0
        %930 = vmatprep.mubr.f32.mxu0 0.0
        %931 = vmatmul.mubr.f32.gmra.mrb[0].mxu0 %v819
        %v932 = vpop.f32.mrb[0].mxu0
        %v933 = vadd.f32 %v815, %v932
        %v934 = vpop.f32.mrb[0].mxu0
        %935 = vmatprep.mubr.f32.mxu0 0.0
        %936 = vmatmul.mubr.f32.gmra.mrb[0].mxu0 %v822
        %v937 = vpop.f32.mrb[0].mxu0
        %v938 = vadd.f32 %v815, %v937
        %v939 = vpop.f32.mrb[0].mxu0
        %940 = vmatprep.mubr.f32.mxu0 0.0
        %941 = vmatmul.mubr.f32.gmra.mrb[0].mxu0 %v825
        %v942 = vpop.f32.mrb[0].mxu0
        %v943 = vadd.f32 %v815, %v942
        %v944 = vpop.f32.mrb[0].mxu0
        %945 = vmatprep.mubr.f32.mxu0 0.0
        %946 = vmatmul.mubr.f32.gmra.mrb[0].mxu0 %v828
        %v947 = vpop.f32.mrb[0].mxu0
        %v948 = vadd.f32 %v815, %v947
        %v949 = vpop.f32.mrb[0].mxu0
        %950 = vmatprep.mubr.f32.mxu0 0.0
        %951 = vmatmul.mubr.f32.gmra.mrb[0].mxu0 %v831
        %v952 = vpop.f32.mrb[0].mxu0
        %v953 = vadd.f32 %v815, %v952
        %v954 = vpop.f32.mrb[0].mxu0
        %955 = vmatprep.mubr.f32.mxu0 0.0
        %956 = vmatmul.mubr.f32.gmra.mrb[0].mxu0 %v834
        %v957 = vpop.f32.mrb[0].mxu0
        %v958 = vadd.f32 %v815, %v957
        %v959 = vpop.f32.mrb[0].mxu0
        %960 = vmatprep.mubr.f32.mxu0 0.0
        %961 = vmatmul.mubr.f32.gmra.mrb[0].mxu0 %v837
        %v962 = vpop.f32.mrb[0].mxu0
        %v963 = vadd.f32 %v815, %v962
        %v964 = vpop.f32.mrb[0].mxu0
        %965 = vmatprep.mubr.f32.mxu0 0.0
        %966 = vmatmul.mubr.f32.gmra.mrb[0].mxu0 %v840
        %v967 = vpop.f32.mrb[0].mxu0
        %v968 = vadd.f32 %v815, %v967
        %v969 = vpop.f32.mrb[0].mxu0
        %970 = vmatprep.mubr.f32.mxu0 0.0
        %971 = vmatmul.mubr.f32.gmra.mrb[0].mxu0 %v843
        %v972 = vpop.f32.mrb[0].mxu0
        %v973 = vadd.f32 %v815, %v972
        %v974 = vpop.f32.mrb[0].mxu0
        %975 = vmatprep.mubr.f32.mxu0 0.0
        %976 = vmatmul.mubr.f32.gmra.mrb[0].mxu0 %v846
        %v977 = vpop.f32.mrb[0].mxu0
        %v978 = vadd.f32 %v815, %v977
        %v979 = vpop.f32.mrb[0].mxu0
        %980 = vmatprep.mubr.f32.mxu0 0.0
        %981 = vmatmul.mubr.f32.gmra.mrb[0].mxu0 %v849
        %v982 = vpop.f32.mrb[0].mxu0
        %v983 = vadd.f32 %v815, %v982
        %v984 = vpop.f32.mrb[0].mxu0
        %985 = vmatprep.mubr.f32.mxu0 0.0
        %986 = vmatmul.mubr.f32.gmra.mrb[0].mxu0 %v852
        %v987 = vpop.f32.mrb[0].mxu0
        %v988 = vadd.f32 %v815, %v987
        %v989 = vpop.f32.mrb[0].mxu0
        %990 = vmatprep.mubr.f32.mxu0 0.0
        %991 = vmatmul.mubr.f32.gmra.mrb[0].mxu0 %v855
        %v992 = vpop.f32.mrb[0].mxu0
        %v993 = vadd.f32 %v815, %v992
        %v994 = vpop.f32.mrb[0].mxu0
        %995 = vmatprep.mubr.f32.mxu0 0.0
        %996 = vmatmul.mubr.f32.gmra.mrb[0].mxu0 %v858
        %v997 = vpop.f32.mrb[0].mxu0
        %v998 = vadd.f32 %v815, %v997
        %v999 = vpop.f32.mrb[0].mxu0
        %1000 = vmatprep.mubr.f32.mxu0 0.0
        %1001 = vmatmul.mubr.f32.gmra.mrb[0].mxu0 %v861
        %v1002 = vpop.f32.mrb[0].mxu0
        %v1003 = vadd.f32 %v815, %v1002
        %v1004 = vpop.f32.mrb[0].mxu0
        %1005 = vmatprep.mubr.f32.mxu0 0.0
        %1006 = vmatmul.mubr.f32.gmra.mrb[0].mxu0 %v864
        %v1007 = vpop.f32.mrb[0].mxu0
        %v1008 = vadd.f32 %v815, %v1007
        %v1009 = vpop.f32.mrb[0].mxu0
        %1010 = vdwg.mxu0
        %v1011 = vmul.f32 %v933, 0.01
        %v1012 = vmul.f32 %v938, 0.01
        %v1013 = vmul.f32 %v943, 0.01
        %v1014 = vmul.f32 %v948, 0.01
        %v1015 = vmul.f32 %v953, 0.01
        %v1016 = vmul.f32 %v958, 0.01
        %v1017 = vmul.f32 %v963, 0.01
        %v1018 = vmul.f32 %v968, 0.01
        %v1019 = vmul.f32 %v973, 0.01
        %v1020 = vmul.f32 %v978, 0.01
        %v1021 = vmul.f32 %v983, 0.01
        %v1022 = vmul.f32 %v988, 0.01
        %v1023 = vmul.f32 %v993, 0.01
        %v1024 = vmul.f32 %v998, 0.01
        %v1025 = vmul.f32 %v1003, 0.01
        %v1026 = vmul.f32 %v1008, 0.01
        %v1027 = vmax.f32 %v933, %v1011
        %v1028 = vmax.f32 %v938, %v1012
        %v1029 = vmax.f32 %v943, %v1013
        %v1030 = vmax.f32 %v948, %v1014
        %v1031 = vmax.f32 %v953, %v1015
        %v1032 = vmax.f32 %v958, %v1016
        %v1033 = vmax.f32 %v963, %v1017
        %v1034 = vmax.f32 %v968, %v1018
        %v1035 = vmax.f32 %v973, %v1019
        %v1036 = vmax.f32 %v978, %v1020
        %v1037 = vmax.f32 %v983, %v1021
        %v1038 = vmax.f32 %v988, %v1022
        %v1039 = vmax.f32 %v993, %v1023
        %v1040 = vmax.f32 %v998, %v1024
        %v1041 = vmax.f32 %v1003, %v1025
        %v1042 = vmax.f32 %v1008, %v1026
        %v1043 = vld [vmem:[%s6] sm:$0xff]
        %v1045 = vsel %vm817, %v1043, 0
        %v1048 = vsel %vm817, %v1027, 0
        %v1051 = vsel %vm817, %v1028, 0
        %v1054 = vsel %vm817, %v1029, 0
        %v1057 = vsel %vm817, %v1030, 0
        %v1060 = vsel %vm817, %v1031, 0
        %v1063 = vsel %vm817, %v1032, 0
        %v1066 = vsel %vm817, %v1033, 0
        %v1069 = vsel %vm817, %v1034, 0
        %v1072 = vsel %vm817, %v1035, 0
        %v1075 = vsel %vm817, %v1036, 0
        %v1078 = vsel %vm817, %v1037, 0
        %v1081 = vsel %vm817, %v1038, 0
        %v1084 = vsel %vm817, %v1039, 0
        %v1087 = vsel %vm817, %v1040, 0
        %v1090 = vsel %vm817, %v1041, 0
        %v1093 = vsel %vm817, %v1042, 0
        %1095 = vmatprep.subr.mxu0 0.0
        %1096 = vmatpush1.xpose.msra.mxu0 %v1048
        %1097 = vmatprep.subr.mxu0 0.0
        %1098 = vmatpush1.xpose.msra.mxu0 %v1051
        %1099 = vmatprep.subr.mxu0 0.0
        %1100 = vmatpush1.xpose.msra.mxu0 %v1054
        %1101 = vmatprep.subr.mxu0 0.0
        %1102 = vmatpush1.xpose.msra.mxu0 %v1057
        %1103 = vmatprep.subr.mxu0 0.0
        %1104 = vmatpush1.xpose.msra.mxu0 %v1060
        %1105 = vmatprep.subr.mxu0 0.0
        %1106 = vmatpush1.xpose.msra.mxu0 %v1063
        %1107 = vmatprep.subr.mxu0 0.0
        %1108 = vmatpush1.xpose.msra.mxu0 %v1066
        %1109 = vmatprep.subr.mxu0 0.0
        %1110 = vmatpush1.xpose.msra.mxu0 %v1069
        %1111 = vmatprep.subr.mxu0 0.0
        %1112 = vmatpush1.xpose.msra.mxu0 %v1072
        %1113 = vmatprep.subr.mxu0 0.0
        %1114 = vmatpush1.xpose.msra.mxu0 %v1075
        %1115 = vmatprep.subr.mxu0 0.0
        %1116 = vmatpush1.xpose.msra.mxu0 %v1078
        %1117 = vmatprep.subr.mxu0 0.0
        %1118 = vmatpush1.xpose.msra.mxu0 %v1081
        %1119 = vmatprep.subr.mxu0 0.0
        %1120 = vmatpush1.xpose.msra.mxu0 %v1084
        %1121 = vmatprep.subr.mxu0 0.0
        %1122 = vmatpush1.xpose.msra.mxu0 %v1087
        %1123 = vmatprep.subr.mxu0 0.0
        %1124 = vmatpush1.xpose.msra.mxu0 %v1090
        %1125 = vmatprep.subr.mxu0 0.0
        %1126 = vmatpush1.xpose.msra.mxu0 %v1093
        %1127 = vmatprep.subr.mxu0 0.0
        %1128 = vmatpush1.xpose.msra.mxu0 0.0
        %1129 = vmatprep.subr.mxu0 0.0
        %1130 = vmatpush1.xpose.msra.mxu0 0.0
        %1131 = vmatprep.subr.mxu0 0.0
        %1132 = vmatpush1.xpose.msra.mxu0 0.0
        %1133 = vmatprep.subr.mxu0 0.0
        %1134 = vmatpush1.xpose.msra.mxu0 0.0
        %1135 = vmatprep.subr.mxu0 0.0
        %1136 = vmatpush1.xpose.msra.mxu0 0.0
        %1137 = vmatprep.subr.mxu0 0.0
        %1138 = vmatpush1.xpose.msra.mxu0 0.0
        %1139 = vmatprep.subr.mxu0 0.0
        %1140 = vmatpush1.xpose.msra.mxu0 0.0
        %1141 = vmatprep.subr.mxu0 0.0
        %1142 = vmatpush1.xpose.msra.mxu0 0.0
        %1143 = vmatprep.subr.mxu0 0.0
        %1144 = vmatpush1.xpose.msra.mxu0 0.0
        %1145 = vmatprep.subr.mxu0 0.0
        %1146 = vmatpush1.xpose.msra.mxu0 0.0
        %1147 = vmatprep.subr.mxu0 0.0
        %1148 = vmatpush1.xpose.msra.mxu0 0.0
        %1149 = vmatprep.subr.mxu0 0.0
        %1150 = vmatpush1.xpose.msra.mxu0 0.0
        %1151 = vmatprep.subr.mxu0 0.0
        %1152 = vmatpush1.xpose.msra.mxu0 0.0
        %1153 = vmatprep.subr.mxu0 0.0
        %1154 = vmatpush1.xpose.msra.mxu0 0.0
        %1155 = vmatprep.subr.mxu0 0.0
        %1156 = vmatpush1.xpose.msra.mxu0 0.0
        %1157 = vmatprep.subr.mxu0 0.0
        %1158 = vmatpush1.xpose.msra.mxu0 0.0
        %1159 = vmatprep.mubr.f32.mxu0 0.0
        %1160 = vmatmul.mubr.f32.gmra.mrb[0].mxu0 %v1045
        %v1161 = vpop.f32.mrb[0].mxu0
        %v1162 = vadd.f32 0.0, %v1161
        %v1163 = vpop.f32.mrb[0].mxu0
        %1164 = vdwg.mxu0
        %s1165 = sld [smem:[#allocation2]]
        %v1166 = vstv %s1165
        %v1167 = vadd.f32 %v1162, %v1166
        %1168 = vst [vmem:[%s315] sm:$0x1] %v1167
        %s1169 = sand.u32 %s209, 1
        %s1170 = scalar_lea.sflag [#allocation4], %s1169
        %s1171 = sand.u32 %s209, 1
        %s1172 = scalar_lea.vmem [#allocation3], %s1171
        // Predicated region
        $region53: #{critic_forward.1} parent=51 // pred_check
          %p1173 = pneg %p219
        $region54: #{critic_forward.1} parent=51 // pred_check_branch
          %1175 = sbr.rel (%p1173) target = $region56
        $region55: #{critic_forward.1} parent=51 // pred_region
          %s1177 = ssub.s32 16, 16
          %1178 = vsyncadd %s1170, %s1177
          %s1179 = smul.addr %s23, 16
          %s1180 = scalar_lea.hbm %s8, %s1179
          %s1182 = sshll.u32 %s1172, 4
          %s1183 = int_to_ptr.vmem [resolvable:$true] %s1182
          %1185 = dma.vmem_to_hbm [thread:$0]  %s1183, 16, %s1180, %s1170
        $region56: #{critic_forward.1} parent=51 // pred_fallthru
          _
      $region52: #{critic_forward.1} parent=5 // pred_fallthru
        _
      %p1186 = scmp.le.s32.totalorder 2, %s18
      // Predicated region
      $region57: #{critic_forward.1} parent=5 // pred_check
        %p1187 = pneg %p1186
      $region58: #{critic_forward.1} parent=5 // pred_check_branch
        %1189 = sbr.rel (%p1187) target = $region60
      $region59: #{critic_forward.1} parent=5 // pred_region
        %s1190 = ssub.s32 %s18, 2
        // Predicated region
        $region61: #{critic_forward.1} parent=59 // pred_check
          %p1191 = pneg %p225
        $region62: #{critic_forward.1} parent=59 // pred_check_branch
          %1193 = sbr.rel (%p1191) target = $region64
        $region63: #{critic_forward.1} parent=59 // pred_region
          %s1194 = sand.u32 %s210, 1
          %s1195 = scalar_lea.sflag [#allocation4], %s1194
          %s1196 = sand.u32 %s210, 1
          %s1197 = scalar_lea.vmem [#allocation3], %s1196
          %1198 = dma.done %s1195, 16
        $region64: #{critic_forward.1} parent=59 // pred_fallthru
          _
      $region60: #{critic_forward.1} parent=5 // pred_fallthru
        _
    $region6: #{critic_forward.1} parent=1 // loop_footer
      %s22 = sadd.s32 1, %s18
    $region7: #{critic_forward.1} parent=1 // loop_footer_branch
      %17 = sbr.rel target = $region3
    $region8: #{critic_forward.1} parent=1 // loop_exit
      _
    %1199 = vsyncpa [#allocation4], 1
    %s1200 = scalar_lea.sflag [#allocation4], 1
    %1201 = vsyncpa %s1200, 1

</llo_original>
